<compile_context>
chip_gen: v7x
topology: tpu7x:2x2x1
jax: 0.10.0
libtpu: 0.0.40
codegen_flags: <defaults>
</compile_context>

<pallas_src>
import functools

import jax
import jax.numpy as jnp
from jax.experimental import pallas as pl
from jax.experimental.pallas import tpu as pltpu

LANE = 128


def _round_up(x, m):
    return (x + m - 1) // m * m


def _pick_clip_block(n_clips, bytes_per_clip, x_buf_budget=8 << 20):
    """Pick the clip-block size NB (grid tile along the clip axis).

    Criteria (perf review): NB a multiple of 8 dividing N (sublane-aligned f32
    score stores), single x buffer <= ~8 MiB (double buffer stays inside the
    v7x 64 MiB / 32 MiB-scoped VMEM budget), prefer >=4 grid steps so the
    pipeline hides the HBM fetch, else >=2, else 1.
    """
    cands = [nb for nb in range(8, n_clips + 1, 8) if n_clips % nb == 0]
    if not cands:
        return n_clips  # small / odd N: single (possibly sublane-masked) block
    fitting = [nb for nb in cands if nb * bytes_per_clip <= x_buf_budget] or [cands[0]]
    for min_steps in (4, 2, 1):
        pref = [nb for nb in fitting if n_clips // nb >= min_steps]
        if pref:
            return max(pref)
    return max(fitting)


# ----------------------------------------------------------------------------
# Fused kernel:
#   x [NB, C, HW] bf16 --mean(axis=-1, f32)--> feat [NB, C]
#   feat @ W1 + b1, relu  (bf16 MXU, f32 acc)   -> h [NB, Hp]
#   h @ W2 + b2           (bf16 MXU, f32 acc)   -> score [NB, Kp]  (stored)
#   masked softmax over real K, accumulate clip means in f32 scratch,
#   write both [1, Kp] averages once on the last grid step.
# ----------------------------------------------------------------------------
def fused_recognizer_kernel(x_ref, w1_ref, b1_ref, w2_ref, b2_ref,
                            score_ref, prob_ref, mean_ref,
                            prob_acc, mean_acc,
                            *, num_classes, inv_n):
    i = pl.program_id(0)
    n_steps = pl.num_programs(0)

    @pl.when(i == 0)
    def _():
        prob_acc[...] = jnp.zeros_like(prob_acc)
        mean_acc[...] = jnp.zeros_like(mean_acc)

    # Global average pool over the spatial (lane) axis, in f32.
    x = x_ref[...].astype(jnp.float32)                       # [NB, C, HW]
    feat = jnp.mean(x, axis=-1)                              # [NB, C] f32

    # MXU matmuls: bf16 operands, f32 accumulation; bias/relu in f32 (VPU).
    h = jnp.dot(feat.astype(jnp.bfloat16), w1_ref[...],
                preferred_element_type=jnp.float32) + b1_ref[...]   # [NB, Hp]
    h = jnp.maximum(h, 0.0)
    s = jnp.dot(h.astype(jnp.bfloat16), w2_ref[...],
                preferred_element_type=jnp.float32) + b2_ref[...]   # [NB, Kp]
    score_ref[...] = s

    # Softmax over the real num_classes columns only (padded lanes masked out).
    lane_idx = jax.lax.broadcasted_iota(jnp.int32, s.shape, dimension=1)
    valid = lane_idx < num_classes
    s_m = jnp.where(valid, s, -jnp.inf)
    m = jnp.max(s_m, axis=1, keepdims=True)
    e = jnp.exp(s_m - m)                                     # exp(-inf) -> 0 on pad
    p = e * pl.reciprocal(jnp.sum(e, axis=1, keepdims=True), approx=True)

    # Scaled sums in scratch so the final values are the clip means.
    prob_acc[...] += jnp.sum(p, axis=0, keepdims=True) * inv_n
    mean_acc[...] += jnp.sum(s, axis=0, keepdims=True) * inv_n

    @pl.when(i == n_steps - 1)
    def _():
        prob_ref[...] = prob_acc[...]
        mean_ref[...] = mean_acc[...]


def recognizer_forward_test(img_group, w1, b1, w2, b2, clip_block=None):
    """img_group [N, C, H, W] f32 -> (cls_score [N,K], avg_prob [1,K], avg_score [1,K])."""
    N, C, H, W = img_group.shape
    HW = H * W
    HIDDEN = w1.shape[1]
    K = w2.shape[1]
    Hp = _round_up(HIDDEN, LANE)
    Kp = _round_up(K, LANE)

    # Zero-copy layout [N, C, HW]: HW on lanes (dense DMA rows, no transpose pass).
    # bf16 input feed for the MXU path; in production the input would already
    # arrive in bf16 (the cast here is a thin XLA op outside the kernel).
    x = img_group.reshape(N, C, HW).astype(jnp.bfloat16)

    # Zero-pad params to lane-dense widths (padded h columns are relu(0)=0,
    # padded score columns are 0; softmax is masked in-kernel). Weights bf16,
    # biases f32 (added post-accumulation).
    w1p = jnp.zeros((C, Hp), jnp.bfloat16).at[:, :HIDDEN].set(w1.astype(jnp.bfloat16))
    b1p = jnp.zeros((1, Hp), jnp.float32).at[:, :HIDDEN].set(b1)
    w2p = jnp.zeros((Hp, Kp), jnp.bfloat16).at[:HIDDEN, :K].set(w2.astype(jnp.bfloat16))
    b2p = jnp.zeros((1, Kp), jnp.float32).at[:, :K].set(b2)

    bytes_per_clip = C * HW * 2  # bf16 x tile bytes per clip
    NB = _pick_clip_block(N, bytes_per_clip) if clip_block is None else clip_block
    assert N % NB == 0, "clip_block must divide the number of clips"
    # NB % 8 == 0 keeps the f32 score stores sublane-aligned (correct either way).
    grid = (N // NB,)

    kern = functools.partial(fused_recognizer_kernel,
                             num_classes=K, inv_n=1.0 / N)

    cost = pl.CostEstimate(
        flops=2 * N * (C * HIDDEN + HIDDEN * K) + N * C * HW,
        transcendentals=N * K,
        bytes_accessed=(x.size * 2 + w1p.size * 2 + w2p.size * 2
                        + (b1p.size + b2p.size) * 4
                        + N * Kp * 4 + 2 * Kp * 4),
    )

    score_pad, prob_pad, mean_pad = pl.pallas_call(
        kern,
        out_shape=(jax.ShapeDtypeStruct((N, Kp), jnp.float32),
                   jax.ShapeDtypeStruct((1, Kp), jnp.float32),
                   jax.ShapeDtypeStruct((1, Kp), jnp.float32)),
        grid_spec=pltpu.PrefetchScalarGridSpec(
            num_scalar_prefetch=0,
            grid=grid,
            in_specs=[
                pl.BlockSpec((NB, C, HW), lambda i: (i, 0, 0)),   # x tile per clip block
                pl.BlockSpec((C, Hp), lambda i: (0, 0)),          # W1 (constant block)
                pl.BlockSpec((1, Hp), lambda i: (0, 0)),          # b1
                pl.BlockSpec((Hp, Kp), lambda i: (0, 0)),         # W2
                pl.BlockSpec((1, Kp), lambda i: (0, 0)),          # b2
            ],
            out_specs=[
                pl.BlockSpec((NB, Kp), lambda i: (i, 0)),         # cls_score
                pl.BlockSpec((1, Kp), lambda i: (0, 0)),          # prob average
                pl.BlockSpec((1, Kp), lambda i: (0, 0)),          # score-mean average
            ],
            scratch_shapes=[pltpu.VMEM((1, Kp), jnp.float32),     # prob accumulator
                            pltpu.VMEM((1, Kp), jnp.float32)],    # mean accumulator
        ),
        # Clip axis is a reduction for the averaged outputs -> 'arbitrary'.
        compiler_params=pltpu.CompilerParams(
            dimension_semantics=("arbitrary",),
            vmem_limit_bytes=32 * 1024 * 1024),
        cost_estimate=cost,
    )(x, w1p, b1p, w2p, b2p)

    # Crop the lane padding back to the real class count (outside the kernel).
    return score_pad[:, :K], prob_pad[:, :K], mean_pad[:, :K]


def average_clip(cls_score, avg_prob, avg_score, average_clips='prob'):
    """Selection mirroring BaseRecognizer.average_clip (averages already fused)."""
    if average_clips not in ['score', 'prob', None]:
        raise ValueError(f'{average_clips} is not supported. Currently supported '
                         f'ones are ["score", "prob", None]')
    if average_clips is None:
        return cls_score
    return avg_prob if average_clips == 'prob' else avg_score


if __name__ == "__main__":
    # Small deterministic shapes: num_clips=16, C=4, H=W=16, hidden=32, classes=10
    # (N=16 with NB=8 gives a 2-step grid exercising the accumulator pipeline).
    N, C, H, W = 16, 4, 16, 16
    HIDDEN, NUM_CLASSES = 32, 10

    key = jax.random.PRNGKey(0)
    k_img, k_w1, k_w2 = jax.random.split(key, 3)

    img_group = jax.random.normal(k_img, (N, C, H, W), dtype=jnp.float32)

    # Deterministic synthetic parameters (backbone projection + cls_head).
    w1 = jax.random.normal(k_w1, (C, HIDDEN), dtype=jnp.float32) * 0.1
    b1 = jnp.zeros((1, HIDDEN), dtype=jnp.float32)
    w2 = jax.random.normal(k_w2, (HIDDEN, NUM_CLASSES), dtype=jnp.float32) * 0.1
    b2 = jnp.zeros((1, NUM_CLASSES), dtype=jnp.float32)

    # Single fused call: extract_feat -> cls_head -> both clip averages.
    cls_score, avg_prob, avg_score = recognizer_forward_test(img_group, w1, b1, w2, b2)
    jax.block_until_ready((cls_score, avg_prob, avg_score))

    # Module-style selection.
    out_prob = average_clip(cls_score, avg_prob, avg_score, 'prob')
    out_score = average_clip(cls_score, avg_prob, avg_score, 'score')
    out_none = average_clip(cls_score, avg_prob, avg_score, None)

    # Reference check against plain JAX in f32 (same math as the PyTorch module).
    feat_ref = img_group.reshape(N, C, -1).mean(-1)
    h_ref = jnp.maximum(feat_ref @ w1 + b1, 0.0)
    score_ref = h_ref @ w2 + b2
    prob_ref = jnp.mean(jax.nn.softmax(score_ref, axis=1), axis=0, keepdims=True)
    mean_ref = jnp.mean(score_ref, axis=0, keepdims=True)

    # bf16 MXU operands + approx EUP reciprocal -> relaxed tolerances vs f32 ref.
    assert jnp.allclose(cls_score, score_ref, atol=2e-3), "cls_score mismatch"
    assert jnp.allclose(out_prob, prob_ref, atol=2e-3), "average_clip('prob') mismatch"
    assert jnp.allclose(out_score, mean_ref, atol=2e-3), "average_clip('score') mismatch"
    assert out_none.shape == (N, NUM_CLASSES)
    assert out_prob.shape == (1, NUM_CLASSES)
    assert out_score.shape == (1, NUM_CLASSES)

    print("KERNEL_OK")
</pallas_src>

<mosaic_0001>
module attributes {stable_mosaic.version = 11 : i64} {
  func.func @fused_recognizer_kernel(%arg0: i32, %arg1: memref<8x4x256xbf16, #tpu.memory_space<vmem>>, %arg2: memref<4x128xbf16, #tpu.memory_space<vmem>>, %arg3: memref<1x128xf32, #tpu.memory_space<vmem>>, %arg4: memref<128x128xbf16, #tpu.memory_space<vmem>>, %arg5: memref<1x128xf32, #tpu.memory_space<vmem>>, %arg6: memref<8x128xf32, #tpu.memory_space<vmem>>, %arg7: memref<1x128xf32, #tpu.memory_space<vmem>>, %arg8: memref<1x128xf32, #tpu.memory_space<vmem>>, %arg9: memref<1x128xf32, #tpu.memory_space<vmem>>, %arg10: memref<1x128xf32, #tpu.memory_space<vmem>>) attributes {dimension_semantics = [#tpu.dimension_semantics<arbitrary>], iteration_bounds = array<i64: 2>, scalar_prefetch = 0 : i64, scratch_operands = 2 : i64, tpu.core_type = #tpu.core_type<tc>, window_params = [{transform_indices = @transform_0, window_bounds = array<i64: 8, 4, 256>}, {pipeline_mode = #tpu.pipeline_mode<synchronous>, transform_indices = @transform_1, window_bounds = array<i64: 4, 128>}, {pipeline_mode = #tpu.pipeline_mode<synchronous>, transform_indices = @transform_2, window_bounds = array<i64: 1, 128>}, {pipeline_mode = #tpu.pipeline_mode<synchronous>, transform_indices = @transform_3, window_bounds = array<i64: 128, 128>}, {pipeline_mode = #tpu.pipeline_mode<synchronous>, transform_indices = @transform_4, window_bounds = array<i64: 1, 128>}, {transform_indices = @transform_5, window_bounds = array<i64: 8, 128>}, {pipeline_mode = #tpu.pipeline_mode<synchronous>, transform_indices = @transform_6, window_bounds = array<i64: 1, 128>}, {pipeline_mode = #tpu.pipeline_mode<synchronous>, transform_indices = @transform_7, window_bounds = array<i64: 1, 128>}]} {
    %c0_i32 = arith.constant 0 : i32
    %0 = arith.cmpi eq, %arg0, %c0_i32 : i32
    %1 = arith.extui %0 : i1 to i32
    %c0_i32_0 = arith.constant 0 : i32
    %2 = arith.cmpi ne, %1, %c0_i32_0 : i32
    scf.if %2 {
      %cst_33 = arith.constant 0.000000e+00 : f32
      %55 = vector.broadcast %cst_33 : f32 to vector<1x128xf32>
      %c0_34 = arith.constant 0 : index
      %c0_35 = arith.constant 0 : index
      %56 = vector.load %arg9[%c0_34, %c0_35] : memref<1x128xf32, #tpu.memory_space<vmem>>, vector<1x128xf32>
      tpu.vector_store %arg9[%c0_34, %c0_35], %55 {strides = array<i32>} : memref<1x128xf32, #tpu.memory_space<vmem>>, vector<1x128xf32>,
      %cst_36 = arith.constant 0.000000e+00 : f32
      %57 = vector.broadcast %cst_36 : f32 to vector<1x128xf32>
      %c0_37 = arith.constant 0 : index
      %c0_38 = arith.constant 0 : index
      %58 = vector.load %arg10[%c0_37, %c0_38] : memref<1x128xf32, #tpu.memory_space<vmem>>, vector<1x128xf32>
      tpu.vector_store %arg10[%c0_37, %c0_38], %57 {strides = array<i32>} : memref<1x128xf32, #tpu.memory_space<vmem>>, vector<1x128xf32>,
    } else {
    }
    %c0 = arith.constant 0 : index
    %c0_1 = arith.constant 0 : index
    %c0_2 = arith.constant 0 : index
    %3 = vector.load %arg1[%c0, %c0_1, %c0_2] : memref<8x4x256xbf16, #tpu.memory_space<vmem>>, vector<8x4x256xbf16>
    %4 = arith.extf %3 : vector<8x4x256xbf16> to vector<8x4x256xf32>
    %cst = arith.constant dense<0.000000e+00> : vector<8x4xf32>
    %5 = vector.multi_reduction <add>, %4, %cst [2] : vector<8x4x256xf32> to vector<8x4xf32>
    %cst_3 = arith.constant 2.560000e+02 : f32
    %6 = vector.broadcast %cst_3 : f32 to vector<8x4xf32>
    %7 = arith.divf %5, %6 : vector<8x4xf32>
    %8 = arith.truncf %7 : vector<8x4xf32> to vector<8x4xbf16>
    %c0_4 = arith.constant 0 : index
    %c0_5 = arith.constant 0 : index
    %9 = vector.load %arg2[%c0_4, %c0_5] : memref<4x128xbf16, #tpu.memory_space<vmem>>, vector<4x128xbf16>
    %cst_6 = arith.constant dense<0.000000e+00> : vector<8x128xf32>
    %10 = tpu.matmul %8, %9, %cst_6 {dimension_numbers = #tpu.dot_dimension_numbers<[1], [0], [0], [1], [0, 0, 1, 1], [], []>} : vector<8x4xbf16>, vector<4x128xbf16>, vector<8x128xf32> -> vector<8x128xf32>
    %c0_7 = arith.constant 0 : index
    %c0_8 = arith.constant 0 : index
    %11 = vector.load %arg3[%c0_7, %c0_8] : memref<1x128xf32, #tpu.memory_space<vmem>>, vector<1x128xf32>
    %12 = vector.broadcast %11 : vector<1x128xf32> to vector<8x128xf32>
    %13 = arith.addf %10, %12 : vector<8x128xf32>
    %cst_9 = arith.constant 0.000000e+00 : f32
    %14 = vector.broadcast %cst_9 : f32 to vector<8x128xf32>
    %15 = arith.maximumf %13, %14 : vector<8x128xf32>
    %16 = arith.truncf %15 : vector<8x128xf32> to vector<8x128xbf16>
    %c0_10 = arith.constant 0 : index
    %c0_11 = arith.constant 0 : index
    %17 = vector.load %arg4[%c0_10, %c0_11] : memref<128x128xbf16, #tpu.memory_space<vmem>>, vector<128x128xbf16>
    %cst_12 = arith.constant dense<0.000000e+00> : vector<8x128xf32>
    %18 = tpu.matmul %16, %17, %cst_12 {dimension_numbers = #tpu.dot_dimension_numbers<[1], [0], [0], [1], [0, 0, 1, 1], [], []>} : vector<8x128xbf16>, vector<128x128xbf16>, vector<8x128xf32> -> vector<8x128xf32>
    %c0_13 = arith.constant 0 : index
    %c0_14 = arith.constant 0 : index
    %19 = vector.load %arg5[%c0_13, %c0_14] : memref<1x128xf32, #tpu.memory_space<vmem>>, vector<1x128xf32>
    %20 = vector.broadcast %19 : vector<1x128xf32> to vector<8x128xf32>
    %21 = arith.addf %18, %20 : vector<8x128xf32>
    %c0_15 = arith.constant 0 : index
    %c0_16 = arith.constant 0 : index
    %22 = vector.load %arg6[%c0_15, %c0_16] : memref<8x128xf32, #tpu.memory_space<vmem>>, vector<8x128xf32>
    tpu.vector_store %arg6[%c0_15, %c0_16], %21 {strides = array<i32>} : memref<8x128xf32, #tpu.memory_space<vmem>>, vector<8x128xf32>,
    %23 = tpu.iota {dimensions = array<i32: 1>} : vector<8x128xi32>
    %c10_i32 = arith.constant 10 : i32
    %24 = vector.broadcast %c10_i32 : i32 to vector<8x128xi32>
    %25 = arith.cmpi slt, %23, %24 : vector<8x128xi32>
    %cst_17 = arith.constant 0xFF800000 : f32
    %26 = vector.broadcast %cst_17 : f32 to vector<8x128xf32>
    %27 = arith.select %25, %21, %26 : vector<8x128xi1>, vector<8x128xf32>
    %cst_18 = arith.constant dense<0xFF800000> : vector<8xf32>
    %28 = vector.multi_reduction <maximumf>, %27, %cst_18 [1] : vector<8x128xf32> to vector<8xf32>
    %29 = vector.shape_cast %28 : vector<8xf32> to vector<8x1xf32>
    %30 = vector.broadcast %29 : vector<8x1xf32> to vector<8x128xf32>
    %31 = arith.subf %27, %30 : vector<8x128xf32>
    %32 = math.exp %31 : vector<8x128xf32>
    %cst_19 = arith.constant dense<0.000000e+00> : vector<8xf32>
    %33 = vector.multi_reduction <add>, %32, %cst_19 [1] : vector<8x128xf32> to vector<8xf32>
    %34 = vector.shape_cast %33 : vector<8xf32> to vector<8x1xf32>
    %35 = tpu.reciprocal %34 {approx = true} : vector<8x1xf32> -> vector<8x1xf32>
    %36 = vector.broadcast %35 : vector<8x1xf32> to vector<8x128xf32>
    %37 = arith.mulf %32, %36 : vector<8x128xf32>
    %c0_20 = arith.constant 0 : index
    %c0_21 = arith.constant 0 : index
    %38 = vector.load %arg9[%c0_20, %c0_21] : memref<1x128xf32, #tpu.memory_space<vmem>>, vector<1x128xf32>
    %cst_22 = arith.constant dense<0.000000e+00> : vector<128xf32>
    %39 = vector.multi_reduction <add>, %37, %cst_22 [0] : vector<8x128xf32> to vector<128xf32>
    %40 = vector.shape_cast %39 : vector<128xf32> to vector<1x128xf32>
    %cst_23 = arith.constant 6.250000e-02 : f32
    %41 = vector.broadcast %cst_23 : f32 to vector<1x128xf32>
    %42 = arith.mulf %40, %41 : vector<1x128xf32>
    %43 = arith.addf %38, %42 : vector<1x128xf32>
    %c0_24 = arith.constant 0 : index
    %c0_25 = arith.constant 0 : index
    %44 = vector.load %arg9[%c0_24, %c0_25] : memref<1x128xf32, #tpu.memory_space<vmem>>, vector<1x128xf32>
    tpu.vector_store %arg9[%c0_24, %c0_25], %43 {strides = array<i32>} : memref<1x128xf32, #tpu.memory_space<vmem>>, vector<1x128xf32>,
    %c0_26 = arith.constant 0 : index
    %c0_27 = arith.constant 0 : index
    %45 = vector.load %arg10[%c0_26, %c0_27] : memref<1x128xf32, #tpu.memory_space<vmem>>, vector<1x128xf32>
    %cst_28 = arith.constant dense<0.000000e+00> : vector<128xf32>
    %46 = vector.multi_reduction <add>, %21, %cst_28 [0] : vector<8x128xf32> to vector<128xf32>
    %47 = vector.shape_cast %46 : vector<128xf32> to vector<1x128xf32>
    %cst_29 = arith.constant 6.250000e-02 : f32
    %48 = vector.broadcast %cst_29 : f32 to vector<1x128xf32>
    %49 = arith.mulf %47, %48 : vector<1x128xf32>
    %50 = arith.addf %45, %49 : vector<1x128xf32>
    %c0_30 = arith.constant 0 : index
    %c0_31 = arith.constant 0 : index
    %51 = vector.load %arg10[%c0_30, %c0_31] : memref<1x128xf32, #tpu.memory_space<vmem>>, vector<1x128xf32>
    tpu.vector_store %arg10[%c0_30, %c0_31], %50 {strides = array<i32>} : memref<1x128xf32, #tpu.memory_space<vmem>>, vector<1x128xf32>,
    %c1_i32 = arith.constant 1 : i32
    %52 = arith.cmpi eq, %arg0, %c1_i32 : i32
    %53 = arith.extui %52 : i1 to i32
    %c0_i32_32 = arith.constant 0 : i32
    %54 = arith.cmpi ne, %53, %c0_i32_32 : i32
    scf.if %54 {
      %c0_33 = arith.constant 0 : index
      %c0_34 = arith.constant 0 : index
      %55 = vector.load %arg9[%c0_33, %c0_34] : memref<1x128xf32, #tpu.memory_space<vmem>>, vector<1x128xf32>
      %c0_35 = arith.constant 0 : index
      %c0_36 = arith.constant 0 : index
      %56 = vector.load %arg7[%c0_35, %c0_36] : memref<1x128xf32, #tpu.memory_space<vmem>>, vector<1x128xf32>
      tpu.vector_store %arg7[%c0_35, %c0_36], %55 {strides = array<i32>} : memref<1x128xf32, #tpu.memory_space<vmem>>, vector<1x128xf32>,
      %c0_37 = arith.constant 0 : index
      %c0_38 = arith.constant 0 : index
      %57 = vector.load %arg10[%c0_37, %c0_38] : memref<1x128xf32, #tpu.memory_space<vmem>>, vector<1x128xf32>
      %c0_39 = arith.constant 0 : index
      %c0_40 = arith.constant 0 : index
      %58 = vector.load %arg8[%c0_39, %c0_40] : memref<1x128xf32, #tpu.memory_space<vmem>>, vector<1x128xf32>
      tpu.vector_store %arg8[%c0_39, %c0_40], %57 {strides = array<i32>} : memref<1x128xf32, #tpu.memory_space<vmem>>, vector<1x128xf32>,
    } else {
    }
    return
  }
  func.func @transform_0(%arg0: i32) -> (i32, i32, i32) {
    %c0_i32 = arith.constant 0 : i32
    %c0_i32_0 = arith.constant 0 : i32
    %c0_i32_1 = arith.constant 0 : i32
    return %arg0, %c0_i32, %c0_i32_0 : i32, i32, i32
  }
  func.func @transform_1(%arg0: i32) -> (i32, i32) {
    %c0_i32 = arith.constant 0 : i32
    %c0_i32_0 = arith.constant 0 : i32
    %c0_i32_1 = arith.constant 0 : i32
    return %c0_i32, %c0_i32_0 : i32, i32
  }
  func.func @transform_2(%arg0: i32) -> (i32, i32) {
    %c0_i32 = arith.constant 0 : i32
    %c0_i32_0 = arith.constant 0 : i32
    %c0_i32_1 = arith.constant 0 : i32
    return %c0_i32, %c0_i32_0 : i32, i32
  }
  func.func @transform_3(%arg0: i32) -> (i32, i32) {
    %c0_i32 = arith.constant 0 : i32
    %c0_i32_0 = arith.constant 0 : i32
    %c0_i32_1 = arith.constant 0 : i32
    return %c0_i32, %c0_i32_0 : i32, i32
  }
  func.func @transform_4(%arg0: i32) -> (i32, i32) {
    %c0_i32 = arith.constant 0 : i32
    %c0_i32_0 = arith.constant 0 : i32
    %c0_i32_1 = arith.constant 0 : i32
    return %c0_i32, %c0_i32_0 : i32, i32
  }
  func.func @transform_5(%arg0: i32) -> (i32, i32) {
    %c0_i32 = arith.constant 0 : i32
    %c0_i32_0 = arith.constant 0 : i32
    return %arg0, %c0_i32 : i32, i32
  }
  func.func @transform_6(%arg0: i32) -> (i32, i32) {
    %c0_i32 = arith.constant 0 : i32
    %c0_i32_0 = arith.constant 0 : i32
    %c0_i32_1 = arith.constant 0 : i32
    return %c0_i32, %c0_i32_0 : i32, i32
  }
  func.func @transform_7(%arg0: i32) -> (i32, i32) {
    %c0_i32 = arith.constant 0 : i32
    %c0_i32_0 = arith.constant 0 : i32
    %c0_i32_1 = arith.constant 0 : i32
    return %c0_i32, %c0_i32_0 : i32, i32
  }
}

</mosaic_0001>

<llo_original>
// kernel: tpu_custom_call.1
$region0: #{tpu_custom_call.1}
  #allocation0 [shape = 'u32[]', space=smem, size = 0x4, offset = 0x4, fixed_abs, tag = 'smem constant byte address 0x4 - core index']
  #allocation1 [shape = 'u32[144,128]{1,0:T(1,128)}', space=vmem, size = 0x12000, scoped, tag = 'internal scratch']
  #allocation2 [shape = 'f32[1,128]{1,0:T(1,128)}', space=vmem, size = 0x200, scoped, tag = 'scratch operand']
  #allocation3 [shape = 'f32[1,128]{1,0:T(1,128)}', space=vmem, size = 0x200, scoped, tag = 'scratch operand']
  %s0 = inlined_call_operand.hbm [shape: bf16[16,4,256], index: 0, kind: input, shape index: {}]
  %s1 = inlined_call_operand.vmem [shape: bf16[4,128], index: 1, kind: input, shape index: {}]
  %s2 = inlined_call_operand.vmem [shape: f32[1,128], index: 2, kind: input, shape index: {}]
  %s3 = inlined_call_operand.hbm [shape: bf16[128,128], index: 3, kind: input, shape index: {}]
  %s4 = inlined_call_operand.vmem [shape: f32[1,128], index: 4, kind: input, shape index: {}]
  %s5 = inlined_call_operand.hbm [shape: f32[16,128], index: 5, kind: output, shape index: {0}]
  %s6 = inlined_call_operand.hbm [shape: f32[1,128], index: 6, kind: output, shape index: {1}]
  %s7 = inlined_call_operand.hbm [shape: f32[1,128], index: 7, kind: output, shape index: {2}]
  %8 = xla_tuple %s5, %s6, %s7
  %s9 = sld [smem:[#allocation0]]
  $region85: #{tpu_custom_call.1} parent=0
    _
  %s11 = ssub.s32 1, %s9
  %s12 = scalar_select 0, %s11, %s9
  $region1: #{tpu_custom_call.1} parent=0
    #allocation4 [shape = 'u8[32768]{0}', space=vmem, size = 0x8000, scoped, tag = 'input window, operand 0']
    #allocation5 [shape = 's32[2]{0}', space=sflag, size = 0x8, scoped, tag = 'scoped memory for tpu_custom_call.1']
    #allocation6 [shape = 's32[2]{0}', space=sflag, size = 0x8, scoped, tag = 'scoped memory for tpu_custom_call.1']
    #allocation7 [shape = 'u8[32768]{0}', space=vmem, size = 0x8000, scoped, tag = 'input window, operand 3, single buffered']
    #allocation8 [shape = 's32[1]{0}', space=sflag, size = 0x4, scoped, tag = 'scoped memory for tpu_custom_call.1']
    #allocation9 [shape = 'u8[8192]{0}', space=vmem, size = 0x2000, scoped, tag = 'output window, operand 0']
    #allocation10 [shape = 'u8[512]{0}', space=vmem, size = 0x400, scoped, tag = 'output window, operand 1, single buffered']
    #allocation11 [shape = 's32[1]{0}', space=sflag, size = 0x4, scoped, tag = 'scoped memory for tpu_custom_call.1']
    #allocation12 [shape = 'u8[512]{0}', space=vmem, size = 0x400, scoped, tag = 'output window, operand 2, single buffered']
    %13 = vsyncpa [#allocation5], 0
    %s14 = scalar_lea.sflag [#allocation5], 1
    %15 = vsyncpa %s14, 0
    %16 = vsyncpa [#allocation8], 0
    %17 = vsyncpa [#allocation6], 0
    %s18 = scalar_lea.sflag [#allocation6], 1
    %19 = vsyncpa %s18, 0
    %20 = vsyncpa [#allocation11], 0
    loop: start=0, step=1, limit=4
    $region2: #{tpu_custom_call.1} parent=1 // loop_pre_header
      _
    $region3: #{tpu_custom_call.1} parent=1 // loop_header
      %s22 = sphi 0, %s26
      %p23 = scmp.ge.s32.totalorder %s22, 4
      %s32 = sphi 0, %s34
      %s35 = sphi 0, %s32
      %s36 = sphi 0, %s35
      %s52 = sphi 0, %s36
      %s56 = sphi 0, %s56
      %s58 = sphi 0, %s56
      %s59 = sphi 0, %s58
      %s73 = sphi 0, %s59
      %s77 = sphi 0, %s77
      %s79 = sphi 0, %s77
      %s80 = sphi 0, %s79
      %s94 = sphi 0, %s80
      %s98 = sphi 0, %s98
      %s100 = sphi 0, %s98
      %s101 = sphi 0, %s100
      %s115 = sphi 0, %s101
      %s119 = sphi 0, %s119
      %s121 = sphi 0, %s119
      %s122 = sphi 0, %s121
      %s136 = sphi 0, %s122
      %s142 = sphi 0, %s144
      %s145 = sphi 0, %s142
      %s146 = sphi 0, %s145
      %s162 = sphi 0, %s146
      %s166 = sphi 0, %s166
      %s168 = sphi 0, %s166
      %s169 = sphi 0, %s168
      %s183 = sphi 0, %s169
      %s187 = sphi 0, %s187
      %s189 = sphi 0, %s187
      %s190 = sphi 0, %s189
      %s204 = sphi 0, %s190
    $region4: #{tpu_custom_call.1} parent=1 // loop_header_branch
      %25 = sbr.rel (%p23) target = $region8
    $region5: #{tpu_custom_call.1} parent=1 // loop_body
      %s27 = ssub.s32 %s22, 1
      %s28 = ssub.s32 %s22, 2
      %s29 = sadd.s32 %s22, 1
      %s30 = ssub.s32 %s22, %s29
      %p31 = scmp.eq.s32.totalorder %s30, 0
      %s33 = sadd.s32 %s32, 1
      %s34 = scalar_select %p31, %s32, %s33
      %p37 = pneg %p31
      %p38 = scmp.eq.s32.totalorder %s22, 1
      %p39 = por %p37, %p38
      %p40 = scmp.ne.s32.totalorder %s32, %s35
      %p41 = scmp.eq.s32.totalorder %s22, 0
      %p42 = por %p40, %p41
      %p43 = scmp.ne.s32.totalorder %s32, %s35
      %p44 = scmp.eq.s32.totalorder %s27, 1
      %p45 = por %p43, %p44
      %p46 = scmp.ne.s32.totalorder %s35, %s36
      %p47 = scmp.eq.s32.totalorder %s27, 0
      %p48 = por %p46, %p47
      %p49 = scmp.ne.s32.totalorder %s35, %s36
      %p50 = scmp.eq.s32.totalorder %s28, 1
      %p51 = por %p49, %p50
      %p53 = scmp.ne.s32.totalorder %s36, %s52
      %p54 = scmp.eq.s32.totalorder %s28, 0
      %p55 = por %p53, %p54
      %s57 = sadd.s32 %s56, 1
      %p60 = scmp.eq.s32.totalorder %s22, 1
      %p61 = scmp.ne.s32.totalorder %s56, %s58
      %p62 = scmp.eq.s32.totalorder %s22, 0
      %p63 = por %p61, %p62
      %p64 = scmp.ne.s32.totalorder %s56, %s58
      %p65 = scmp.eq.s32.totalorder %s27, 1
      %p66 = por %p64, %p65
      %p67 = scmp.ne.s32.totalorder %s58, %s59
      %p68 = scmp.eq.s32.totalorder %s27, 0
      %p69 = por %p67, %p68
      %p70 = scmp.ne.s32.totalorder %s58, %s59
      %p71 = scmp.eq.s32.totalorder %s28, 1
      %p72 = por %p70, %p71
      %p74 = scmp.ne.s32.totalorder %s59, %s73
      %p75 = scmp.eq.s32.totalorder %s28, 0
      %p76 = por %p74, %p75
      %s78 = sadd.s32 %s77, 1
      %p81 = scmp.eq.s32.totalorder %s22, 1
      %p82 = scmp.ne.s32.totalorder %s77, %s79
      %p83 = scmp.eq.s32.totalorder %s22, 0
      %p84 = por %p82, %p83
      %p85 = scmp.ne.s32.totalorder %s77, %s79
      %p86 = scmp.eq.s32.totalorder %s27, 1
      %p87 = por %p85, %p86
      %p88 = scmp.ne.s32.totalorder %s79, %s80
      %p89 = scmp.eq.s32.totalorder %s27, 0
      %p90 = por %p88, %p89
      %p91 = scmp.ne.s32.totalorder %s79, %s80
      %p92 = scmp.eq.s32.totalorder %s28, 1
      %p93 = por %p91, %p92
      %p95 = scmp.ne.s32.totalorder %s80, %s94
      %p96 = scmp.eq.s32.totalorder %s28, 0
      %p97 = por %p95, %p96
      %s99 = sadd.s32 %s98, 1
      %p102 = scmp.eq.s32.totalorder %s22, 1
      %p103 = scmp.ne.s32.totalorder %s98, %s100
      %p104 = scmp.eq.s32.totalorder %s22, 0
      %p105 = por %p103, %p104
      %p106 = scmp.ne.s32.totalorder %s98, %s100
      %p107 = scmp.eq.s32.totalorder %s27, 1
      %p108 = por %p106, %p107
      %p109 = scmp.ne.s32.totalorder %s100, %s101
      %p110 = scmp.eq.s32.totalorder %s27, 0
      %p111 = por %p109, %p110
      %p112 = scmp.ne.s32.totalorder %s100, %s101
      %p113 = scmp.eq.s32.totalorder %s28, 1
      %p114 = por %p112, %p113
      %p116 = scmp.ne.s32.totalorder %s101, %s115
      %p117 = scmp.eq.s32.totalorder %s28, 0
      %p118 = por %p116, %p117
      %s120 = sadd.s32 %s119, 1
      %p123 = scmp.eq.s32.totalorder %s22, 1
      %p124 = scmp.ne.s32.totalorder %s119, %s121
      %p125 = scmp.eq.s32.totalorder %s22, 0
      %p126 = por %p124, %p125
      %p127 = scmp.ne.s32.totalorder %s119, %s121
      %p128 = scmp.eq.s32.totalorder %s27, 1
      %p129 = por %p127, %p128
      %p130 = scmp.ne.s32.totalorder %s121, %s122
      %p131 = scmp.eq.s32.totalorder %s27, 0
      %p132 = por %p130, %p131
      %p133 = scmp.ne.s32.totalorder %s121, %s122
      %p134 = scmp.eq.s32.totalorder %s28, 1
      %p135 = por %p133, %p134
      %p137 = scmp.ne.s32.totalorder %s122, %s136
      %p138 = scmp.eq.s32.totalorder %s28, 0
      %p139 = por %p137, %p138
      %s140 = ssub.s32 %s22, %s29
      %p141 = scmp.eq.s32.totalorder %s140, 0
      %s143 = sadd.s32 %s142, 1
      %s144 = scalar_select %p141, %s142, %s143
      %p147 = pneg %p141
      %p148 = scmp.eq.s32.totalorder %s22, 1
      %p149 = por %p147, %p148
      %p150 = scmp.ne.s32.totalorder %s142, %s145
      %p151 = scmp.eq.s32.totalorder %s22, 0
      %p152 = por %p150, %p151
      %p153 = scmp.ne.s32.totalorder %s142, %s145
      %p154 = scmp.eq.s32.totalorder %s27, 1
      %p155 = por %p153, %p154
      %p156 = scmp.ne.s32.totalorder %s145, %s146
      %p157 = scmp.eq.s32.totalorder %s27, 0
      %p158 = por %p156, %p157
      %p159 = scmp.ne.s32.totalorder %s145, %s146
      %p160 = scmp.eq.s32.totalorder %s28, 1
      %p161 = por %p159, %p160
      %p163 = scmp.ne.s32.totalorder %s146, %s162
      %p164 = scmp.eq.s32.totalorder %s28, 0
      %p165 = por %p163, %p164
      %s167 = sadd.s32 %s166, 1
      %p170 = scmp.eq.s32.totalorder %s22, 1
      %p171 = scmp.ne.s32.totalorder %s166, %s168
      %p172 = scmp.eq.s32.totalorder %s22, 0
      %p173 = por %p171, %p172
      %p174 = scmp.ne.s32.totalorder %s166, %s168
      %p175 = scmp.eq.s32.totalorder %s27, 1
      %p176 = por %p174, %p175
      %p177 = scmp.ne.s32.totalorder %s168, %s169
      %p178 = scmp.eq.s32.totalorder %s27, 0
      %p179 = por %p177, %p178
      %p180 = scmp.ne.s32.totalorder %s168, %s169
      %p181 = scmp.eq.s32.totalorder %s28, 1
      %p182 = por %p180, %p181
      %p184 = scmp.ne.s32.totalorder %s169, %s183
      %p185 = scmp.eq.s32.totalorder %s28, 0
      %p186 = por %p184, %p185
      %s188 = sadd.s32 %s187, 1
      %p191 = scmp.eq.s32.totalorder %s22, 1
      %p192 = scmp.ne.s32.totalorder %s187, %s189
      %p193 = scmp.eq.s32.totalorder %s22, 0
      %p194 = por %p192, %p193
      %p195 = scmp.ne.s32.totalorder %s187, %s189
      %p196 = scmp.eq.s32.totalorder %s27, 1
      %p197 = por %p195, %p196
      %p198 = scmp.ne.s32.totalorder %s189, %s190
      %p199 = scmp.eq.s32.totalorder %s27, 0
      %p200 = por %p198, %p199
      %p201 = scmp.ne.s32.totalorder %s189, %s190
      %p202 = scmp.eq.s32.totalorder %s28, 1
      %p203 = por %p201, %p202
      %p205 = scmp.ne.s32.totalorder %s190, %s204
      %p206 = scmp.eq.s32.totalorder %s28, 0
      %p207 = por %p205, %p206
      %p208 = scmp.le.s32.totalorder 1, %s22
      %p209 = scmp.lt.s32.totalorder %s22, 3
      %p210 = pnand %p208, %p209
      %p211 = pneg %p210
      // Predicated region
      $region9: #{tpu_custom_call.1} parent=5 // pred_check
        _
      $region10: #{tpu_custom_call.1} parent=5 // pred_check_branch
        %213 = sbr.rel (%p210) target = $region12
      $region11: #{tpu_custom_call.1} parent=5 // pred_region
        %s214 = ssub.s32 %s22, 1
        // Predicated region
        $region13: #{tpu_custom_call.1} parent=11 // pred_check
          %p215 = pneg %p69
        $region14: #{tpu_custom_call.1} parent=11 // pred_check_branch
          %217 = sbr.rel (%p215) target = $region16
        $region15: #{tpu_custom_call.1} parent=11 // pred_region
          _
        $region16: #{tpu_custom_call.1} parent=11 // pred_fallthru
          _
        // Predicated region
        $region17: #{tpu_custom_call.1} parent=11 // pred_check
          %p218 = pneg %p90
        $region18: #{tpu_custom_call.1} parent=11 // pred_check_branch
          %220 = sbr.rel (%p218) target = $region20
        $region19: #{tpu_custom_call.1} parent=11 // pred_region
          _
        $region20: #{tpu_custom_call.1} parent=11 // pred_fallthru
          _
        // Predicated region
        $region21: #{tpu_custom_call.1} parent=11 // pred_check
          %p221 = pneg %p111
        $region22: #{tpu_custom_call.1} parent=11 // pred_check_branch
          %223 = sbr.rel (%p221) target = $region24
        $region23: #{tpu_custom_call.1} parent=11 // pred_region
          %s225 = ssub.s32 1024, 1024
          %226 = vsyncadd [#allocation8], %s225
          %s227 = sshll.u32 [#allocation7], 4
          %s228 = int_to_ptr.vmem [resolvable:$true] %s227
          %233 = dma.hbm_to_vmem [thread:$0]  %s3, 1024, %s228, [#allocation8], 64, 64, 4
        $region24: #{tpu_custom_call.1} parent=11 // pred_fallthru
          _
        // Predicated region
        $region25: #{tpu_custom_call.1} parent=11 // pred_check
          %p234 = pneg %p132
        $region26: #{tpu_custom_call.1} parent=11 // pred_check_branch
          %236 = sbr.rel (%p234) target = $region28
        $region27: #{tpu_custom_call.1} parent=11 // pred_region
          _
        $region28: #{tpu_custom_call.1} parent=11 // pred_fallthru
          _
      $region12: #{tpu_custom_call.1} parent=5 // pred_fallthru
        _
      %p237 = scmp.lt.s32.totalorder %s22, 2
      // Predicated region
      $region29: #{tpu_custom_call.1} parent=5 // pred_check
        %p238 = pneg %p237
      $region30: #{tpu_custom_call.1} parent=5 // pred_check_branch
        %240 = sbr.rel (%p238) target = $region32
      $region31: #{tpu_custom_call.1} parent=5 // pred_region
        // Predicated region
        $region33: #{tpu_custom_call.1} parent=31 // pred_check
          %p241 = pneg %p42
        $region34: #{tpu_custom_call.1} parent=31 // pred_check_branch
          %243 = sbr.rel (%p241) target = $region36
        $region35: #{tpu_custom_call.1} parent=31 // pred_region
          %s244 = sand.u32 %s32, 1
          %s245 = scalar_lea.sflag [#allocation5], %s244
          %s246 = sand.u32 %s32, 1
          %s247 = smul.addr %s246, 32
          %s248 = scalar_lea.vmem [#allocation4], %s247
          %s249 = smul.u32 8, %s22
          %s251 = ssub.s32 512, 512
          %252 = vsyncadd %s245, %s251
          %s253 = smul.addr %s249, 2
          %s254 = smul.addr %s253, 32
          %s255 = scalar_lea.hbm %s0, %s254
          %s256 = sshll.u32 %s248, 4
          %s257 = int_to_ptr.vmem [resolvable:$true] %s256
          %262 = dma.hbm_to_vmem [thread:$0]  %s255, 512, %s257, %s245, 64, 64, 4
        $region36: #{tpu_custom_call.1} parent=31 // pred_fallthru
          _
      $region32: #{tpu_custom_call.1} parent=5 // pred_fallthru
        _
      %p263 = scmp.le.s32.totalorder 1, %s22
      %p264 = scmp.lt.s32.totalorder %s22, 3
      %p265 = pnand %p263, %p264
      %p266 = pneg %p265
      // Predicated region
      $region37: #{tpu_custom_call.1} parent=5 // pred_check
        _
      $region38: #{tpu_custom_call.1} parent=5 // pred_check_branch
        %268 = sbr.rel (%p265) target = $region40
      $region39: #{tpu_custom_call.1} parent=5 // pred_region
        %s269 = ssub.s32 %s22, 1
        %s270 = sand.u32 %s35, 1
        %s271 = scalar_lea.sflag [#allocation5], %s270
        %s272 = sand.u32 %s35, 1
        %s273 = smul.addr %s272, 32
        %s274 = scalar_lea.vmem [#allocation4], %s273
        // Predicated region
        $region41: #{tpu_custom_call.1} parent=39 // pred_check
          %p275 = pneg %p48
        $region42: #{tpu_custom_call.1} parent=39 // pred_check_branch
          %277 = sbr.rel (%p275) target = $region44
        $region43: #{tpu_custom_call.1} parent=39 // pred_region
          %278 = dma.done %s271, 512
        $region44: #{tpu_custom_call.1} parent=39 // pred_fallthru
          _
        // Predicated region
        $region45: #{tpu_custom_call.1} parent=39 // pred_check
          %p279 = pneg %p111
        $region46: #{tpu_custom_call.1} parent=39 // pred_check_branch
          %281 = sbr.rel (%p279) target = $region48
        $region47: #{tpu_custom_call.1} parent=39 // pred_region
          %282 = dma.done [#allocation8], 1024
        $region48: #{tpu_custom_call.1} parent=39 // pred_fallthru
          _
        %s283 = sand.u32 %s35, 1
        %s284 = scalar_lea.sflag [#allocation5], %s283
        %s285 = sand.u32 %s35, 1
        %s286 = smul.addr %s285, 32
        %s287 = scalar_lea.vmem [#allocation4], %s286
        %p288 = pneg %p48
        %p289 = pneg %p45
        %p290 = pneg %p69
        %p291 = pneg %p66
        %p292 = pneg %p90
        %p293 = pneg %p87
        %p294 = pneg %p111
        %p295 = pneg %p108
        %p296 = pneg %p132
        %p297 = pneg %p129
        %p298 = pneg %p158
        %p299 = pneg %p155
        %s300 = sand.u32 %s145, 1
        %s301 = scalar_lea.sflag [#allocation6], %s300
        %s302 = sand.u32 %s145, 1
        %s303 = smul.addr %s302, 8
        %s304 = scalar_lea.vmem [#allocation9], %s303
        %p305 = pneg %p179
        %p306 = pneg %p176
        %p307 = pneg %p200
        %p308 = pneg %p197
        %s309 = smul.u32 8, %s27
        %p311 = scmp.eq.s32.totalorder %s27, 0
        // Predicated region
        $region49: #{tpu_custom_call.1} parent=39 // pred_check
          %p312 = pneg %p311
        $region50: #{tpu_custom_call.1} parent=39 // pred_check_branch
          %314 = sbr.rel (%p312) target = $region52
        $region51: #{tpu_custom_call.1} parent=39 // pred_region
          %315 = vst [vmem:[#allocation2] sm:$0x1] 0.0
          %316 = vst [vmem:[#allocation3] sm:$0x1] 0.0
        $region52: #{tpu_custom_call.1} parent=39 // pred_fallthru
          _
        %v317 = vld [vmem:[%s274] sm:$0xf]
        %v318 = vld [vmem:[%s274 + $0x4] sm:$0xf]
        %v319 = vld [vmem:[%s274 + $0x8] sm:$0xf]
        %v320 = vld [vmem:[%s274 + $0xc] sm:$0xf]
        %v321 = vld [vmem:[%s274 + $0x10] sm:$0xf]
        %v322 = vld [vmem:[%s274 + $0x14] sm:$0xf]
        %v323 = vld [vmem:[%s274 + $0x18] sm:$0xf]
        %v324 = vld [vmem:[%s274 + $0x1c] sm:$0xf]
        %v325 = vunpack.c.l.bf16 %v317
        %v326 = vunpack.c.l.bf16 %v318
        %v327 = vunpack.c.l.bf16 %v319
        %v328 = vunpack.c.l.bf16 %v320
        %v329 = vunpack.c.l.bf16 %v321
        %v330 = vunpack.c.l.bf16 %v322
        %v331 = vunpack.c.l.bf16 %v323
        %v332 = vunpack.c.l.bf16 %v324
        %v341 = vcombine.high %v325, %v325
        %v342 = vcombine.high %v326, %v326
        %v343 = vcombine.high %v327, %v327
        %v344 = vcombine.high %v328, %v328
        %v345 = vcombine.high %v329, %v329
        %v346 = vcombine.high %v330, %v330
        %v347 = vcombine.high %v331, %v331
        %v348 = vcombine.high %v332, %v332
        %vm357 = vcmask 1043456
        %v358 = vsel %vm357, %v325, 0.0
        %v359 = vsel %vm357, %v341, 0.0
        %v360 = vadd.f32 %v358, %v359
        %361 = vadd.xlane.f32.xlu0 %v360
        %v362 = vpop.xlane.xlu0 %361
        %v363 = vsel %vm357, %v326, 0.0
        %v364 = vsel %vm357, %v342, 0.0
        %v365 = vadd.f32 %v363, %v364
        %366 = vadd.xlane.f32.xlu0 %v365
        %v367 = vpop.xlane.xlu0 %366
        %v368 = vsel %vm357, %v327, 0.0
        %v369 = vsel %vm357, %v343, 0.0
        %v370 = vadd.f32 %v368, %v369
        %371 = vadd.xlane.f32.xlu0 %v370
        %v372 = vpop.xlane.xlu0 %371
        %v373 = vsel %vm357, %v328, 0.0
        %v374 = vsel %vm357, %v344, 0.0
        %v375 = vadd.f32 %v373, %v374
        %376 = vadd.xlane.f32.xlu0 %v375
        %v377 = vpop.xlane.xlu0 %376
        %v378 = vsel %vm357, %v329, 0.0
        %v379 = vsel %vm357, %v345, 0.0
        %v380 = vadd.f32 %v378, %v379
        %381 = vadd.xlane.f32.xlu0 %v380
        %v382 = vpop.xlane.xlu0 %381
        %v383 = vsel %vm357, %v330, 0.0
        %v384 = vsel %vm357, %v346, 0.0
        %v385 = vadd.f32 %v383, %v384
        %386 = vadd.xlane.f32.xlu0 %v385
        %v387 = vpop.xlane.xlu0 %386
        %v388 = vsel %vm357, %v331, 0.0
        %v389 = vsel %vm357, %v347, 0.0
        %v390 = vadd.f32 %v388, %v389
        %391 = vadd.xlane.f32.xlu0 %v390
        %v392 = vpop.xlane.xlu0 %391
        %v393 = vsel %vm357, %v332, 0.0
        %v394 = vsel %vm357, %v348, 0.0
        %v395 = vadd.f32 %v393, %v394
        %396 = vadd.xlane.f32.xlu0 %v395
        %v397 = vpop.xlane.xlu0 %396
        %v398 = vrcp.pop 256.0
        %v399 = vmul.f32 %v362, %v398
        %v400 = vmul.f32 %v367, %v398
        %v401 = vmul.f32 %v372, %v398
        %v402 = vmul.f32 %v377, %v398
        %v403 = vmul.f32 %v382, %v398
        %v404 = vmul.f32 %v387, %v398
        %v405 = vmul.f32 %v392, %v398
        %v406 = vmul.f32 %v397, %v398
        %v407 = vpack.c.bf16 %v399, %v399
        %v408 = vpack.c.bf16 %v400, %v400
        %v409 = vpack.c.bf16 %v401, %v401
        %v410 = vpack.c.bf16 %v402, %v402
        %v411 = vpack.c.bf16 %v403, %v403
        %v412 = vpack.c.bf16 %v404, %v404
        %v413 = vpack.c.bf16 %v405, %v405
        %v414 = vpack.c.bf16 %v406, %v406
        %v415 = vld [vmem:[%s1] sm:$0x3]
        %v416 = vld [vmem:[%s2] sm:$0x1]
        %v418 = vlaneseq
        %v419 = vshrl.u32 %v418, 7
        %v420 = vsub.s32 0, %v419
        %v421 = vrot.slane %v416, %v420
        %v431 = vunpack.c.l.b16 %v407
        %v432 = vunpack.c.l.b16 %v408
        %v433 = vunpack.c.l.b16 %v409
        %v434 = vunpack.c.l.b16 %v410
        %v435 = vunpack.c.l.b16 %v411
        %v436 = vunpack.c.l.b16 %v412
        %v437 = vunpack.c.l.b16 %v413
        %v438 = vunpack.c.l.b16 %v414
        %v439 = vlaneseq
        %v440 = vand.u32 %v439, 127
        %v441 = vlaneseq
        %v442 = vshrl.u32 %v441, 7
        %v443 = vsub.s32 %v440, %v442
        %v444 = vrot.slane %v431, %v443
        %v445 = vlaneseq
        %v446 = vshrl.u32 %v445, 7
        %v447 = vsub.s32 %v440, %v446
        %v448 = vrot.slane %v432, %v447
        %v449 = vlaneseq
        %v450 = vshrl.u32 %v449, 7
        %v451 = vsub.s32 %v440, %v450
        %v452 = vrot.slane %v433, %v451
        %v453 = vlaneseq
        %v454 = vshrl.u32 %v453, 7
        %v455 = vsub.s32 %v440, %v454
        %v456 = vrot.slane %v434, %v455
        %v457 = vlaneseq
        %v458 = vshrl.u32 %v457, 7
        %v459 = vsub.s32 %v440, %v458
        %v460 = vrot.slane %v435, %v459
        %v461 = vlaneseq
        %v462 = vshrl.u32 %v461, 7
        %v463 = vsub.s32 %v440, %v462
        %v464 = vrot.slane %v436, %v463
        %v465 = vlaneseq
        %v466 = vshrl.u32 %v465, 7
        %v467 = vsub.s32 %v440, %v466
        %v468 = vrot.slane %v437, %v467
        %v469 = vlaneseq
        %v470 = vshrl.u32 %v469, 7
        %v471 = vsub.s32 %v440, %v470
        %v472 = vrot.slane %v438, %v471
        %vm473 = vcmask 1041409
        %v474 = vsel %vm473, %v448, %v444
        %vm475 = vcmask 1042434
        %v476 = vsel %vm475, %v452, %v474
        %vm477 = vcmask 1043459
        %v478 = vsel %vm477, %v456, %v476
        %vm479 = vcmask 1044484
        %v480 = vsel %vm479, %v460, %v478
        %vm481 = vcmask 1045509
        %v482 = vsel %vm481, %v464, %v480
        %vm483 = vcmask 1046534
        %v484 = vsel %vm483, %v468, %v482
        %vm485 = vcmask 1047559
        %v486 = vsel %vm485, %v472, %v484
        %v487 = vpack.c.b16 %v486, %v486
        %vm488 = vcmask 31744
        %v490 = vsel %vm488, %v487, 0
        %vm492 = vcmask 1041408
        %v494 = vsel %vm492, %v415, 0
        %496 = vmatprep.subr.bf16.mxu0 0
        %497 = vmatpush1.bf16.msra.mxu0 %v494
        %498 = vmatprep.subr.bf16.mxu0 0
        %499 = vmatpush1.bf16.msra.mxu0 0
        %500 = vmatprep.subr.bf16.mxu0 0
        %501 = vmatpush1.bf16.msra.mxu0 0
        %502 = vmatprep.subr.bf16.mxu0 0
        %503 = vmatpush1.bf16.msra.mxu0 0
        %504 = vmatprep.subr.bf16.mxu0 0
        %505 = vmatpush1.bf16.msra.mxu0 0
        %506 = vmatprep.subr.bf16.mxu0 0
        %507 = vmatpush1.bf16.msra.mxu0 0
        %508 = vmatprep.subr.bf16.mxu0 0
        %509 = vmatpush1.bf16.msra.mxu0 0
        %510 = vmatprep.subr.bf16.mxu0 0
        %511 = vmatpush1.bf16.msra.mxu0 0
        %512 = vmatprep.subr.bf16.mxu0 0
        %513 = vmatpush1.bf16.msra.mxu0 0
        %514 = vmatprep.subr.bf16.mxu0 0
        %515 = vmatpush1.bf16.msra.mxu0 0
        %516 = vmatprep.subr.bf16.mxu0 0
        %517 = vmatpush1.bf16.msra.mxu0 0
        %518 = vmatprep.subr.bf16.mxu0 0
        %519 = vmatpush1.bf16.msra.mxu0 0
        %520 = vmatprep.subr.bf16.mxu0 0
        %521 = vmatpush1.bf16.msra.mxu0 0
        %522 = vmatprep.subr.bf16.mxu0 0
        %523 = vmatpush1.bf16.msra.mxu0 0
        %524 = vmatprep.subr.bf16.mxu0 0
        %525 = vmatpush1.bf16.msra.mxu0 0
        %526 = vmatprep.subr.bf16.mxu0 0
        %527 = vmatpush1.bf16.msra.mxu0 0
        %528 = vmatprep.mubr.bf16.mxu0 0
        %529 = vmatmul.mubr.bf16.gmra.mrb[0].mxu0 %v490
        %v530 = vpop.f32.mrb[0].mxu0
        %v531 = vadd.f32 %v421, %v530
        %v532 = vpop.f32.mrb[0].mxu0
        %v533 = vpop.f32.mrb[0].mxu0
        %v534 = vpop.f32.mrb[0].mxu0
        %535 = vdwg.mxu0
        %v536 = vmax.f32 %v531, 0.0
        %v537 = vpack.c.bf16 %v536, %v536
        %v538 = vld [vmem:[#allocation7] sm:$0xf]
        %v539 = vld [vmem:[#allocation7 + $0x4] sm:$0xf]
        %v540 = vld [vmem:[#allocation7 + $0x8] sm:$0xf]
        %v541 = vld [vmem:[#allocation7 + $0xc] sm:$0xf]
        %v542 = vld [vmem:[#allocation7 + $0x10] sm:$0xf]
        %v543 = vld [vmem:[#allocation7 + $0x14] sm:$0xf]
        %v544 = vld [vmem:[#allocation7 + $0x18] sm:$0xf]
        %v545 = vld [vmem:[#allocation7 + $0x1c] sm:$0xf]
        %v546 = vld [vmem:[#allocation7 + $0x20] sm:$0xf]
        %v547 = vld [vmem:[#allocation7 + $0x24] sm:$0xf]
        %v548 = vld [vmem:[#allocation7 + $0x28] sm:$0xf]
        %v549 = vld [vmem:[#allocation7 + $0x2c] sm:$0xf]
        %v550 = vld [vmem:[#allocation7 + $0x30] sm:$0xf]
        %v551 = vld [vmem:[#allocation7 + $0x34] sm:$0xf]
        %v552 = vld [vmem:[#allocation7 + $0x38] sm:$0xf]
        %v553 = vld [vmem:[#allocation7 + $0x3c] sm:$0xf]
        %v554 = vld [vmem:[%s4] sm:$0x1]
        %v556 = vlaneseq
        %v557 = vshrl.u32 %v556, 7
        %v558 = vsub.s32 0, %v557
        %v559 = vrot.slane %v554, %v558
        %v577 = vunpack.c.l.b16 %v538
        %v578 = vunpack.c.l.b16 %v539
        %v579 = vunpack.c.l.b16 %v540
        %v580 = vunpack.c.l.b16 %v541
        %v581 = vunpack.c.l.b16 %v542
        %v582 = vunpack.c.l.b16 %v543
        %v583 = vunpack.c.l.b16 %v544
        %v584 = vunpack.c.l.b16 %v545
        %v585 = vunpack.c.l.b16 %v546
        %v586 = vunpack.c.l.b16 %v547
        %v587 = vunpack.c.l.b16 %v548
        %v588 = vunpack.c.l.b16 %v549
        %v589 = vunpack.c.l.b16 %v550
        %v590 = vunpack.c.l.b16 %v551
        %v591 = vunpack.c.l.b16 %v552
        %v592 = vunpack.c.l.b16 %v553
        %v593 = vpack.c.b16 %v578, %v577
        %v594 = vpack.c.b16 %v580, %v579
        %v595 = vpack.c.b16 %v582, %v581
        %v596 = vpack.c.b16 %v584, %v583
        %v597 = vpack.c.b16 %v586, %v585
        %v598 = vpack.c.b16 %v588, %v587
        %v599 = vpack.c.b16 %v590, %v589
        %v600 = vpack.c.b16 %v592, %v591
        %609 = vmatprep.subr.bf16.mxu0 0
        %610 = vmatpush1.bf16.msra.mxu0 %v593
        %611 = vmatprep.subr.bf16.mxu0 0
        %612 = vmatpush1.bf16.msra.mxu0 %v594
        %613 = vmatprep.subr.bf16.mxu0 0
        %614 = vmatpush1.bf16.msra.mxu0 %v595
        %615 = vmatprep.subr.bf16.mxu0 0
        %616 = vmatpush1.bf16.msra.mxu0 %v596
        %617 = vmatprep.subr.bf16.mxu0 0
        %618 = vmatpush1.bf16.msra.mxu0 %v597
        %619 = vmatprep.subr.bf16.mxu0 0
        %620 = vmatpush1.bf16.msra.mxu0 %v598
        %621 = vmatprep.subr.bf16.mxu0 0
        %622 = vmatpush1.bf16.msra.mxu0 %v599
        %623 = vmatprep.subr.bf16.mxu0 0
        %624 = vmatpush1.bf16.msra.mxu0 %v600
        %625 = vmatprep.subr.bf16.mxu0 0
        %626 = vmatpush1.bf16.msra.mxu0 0
        %627 = vmatprep.subr.bf16.mxu0 0
        %628 = vmatpush1.bf16.msra.mxu0 0
        %629 = vmatprep.subr.bf16.mxu0 0
        %630 = vmatpush1.bf16.msra.mxu0 0
        %631 = vmatprep.subr.bf16.mxu0 0
        %632 = vmatpush1.bf16.msra.mxu0 0
        %633 = vmatprep.subr.bf16.mxu0 0
        %634 = vmatpush1.bf16.msra.mxu0 0
        %635 = vmatprep.subr.bf16.mxu0 0
        %636 = vmatpush1.bf16.msra.mxu0 0
        %637 = vmatprep.subr.bf16.mxu0 0
        %638 = vmatpush1.bf16.msra.mxu0 0
        %639 = vmatprep.subr.bf16.mxu0 0
        %640 = vmatpush1.bf16.msra.mxu0 0
        %641 = vmatprep.mubr.bf16.mxu0 0
        %642 = vmatmul.mubr.bf16.gmra.mrb[0].mxu0 %v537
        %v643 = vpop.f32.mrb[0].mxu0
        %v644 = vadd.f32 %v559, %v643
        %v645 = vpop.f32.mrb[0].mxu0
        %v646 = vpop.f32.mrb[0].mxu0
        %v647 = vpop.f32.mrb[0].mxu0
        %648 = vdwg.mxu0
        %649 = vst [vmem:[%s304] sm:$0xff] %v644
        %vm650 = vcmp.lt.s32.totalorder %v440, 10
        %v651 = vsel %vm650, %v644, -inf
        %652 = vmax.xlane.f32.xlu0 %v651
        %v653 = vpop.xlane.xlu0 %652
        %v654 = vsub.f32 %v651, %v653
        %v655 = vmul.f32 %v654, 1.442695
        %v656 = vpow.pop %v655
        %657 = vadd.xlane.f32.xlu0 %v656
        %v658 = vpop.xlane.xlu0 %657
        %v659 = vrcp.pop %v658
        %v660 = vmul.f32 %v656, %v659
        %v661 = vld [vmem:[#allocation2] sm:$0x1]
        %v662 = vrot.slane %v660, 4
        %v663 = vadd.f32 %v660, %v662
        %v664 = vrot.slane %v663, 2
        %v665 = vadd.f32 %v663, %v664
        %v666 = vrot.slane %v665, 1
        %v667 = vadd.f32 %v665, %v666
        %v668 = vmul.f32 %v667, 0.0625
        %v669 = vadd.f32 %v661, %v668
        %670 = vst [vmem:[#allocation2] sm:$0x1] %v669
        %v671 = vld [vmem:[#allocation3] sm:$0x1]
        %v672 = vrot.slane %v644, 4
        %v673 = vadd.f32 %v644, %v672
        %v674 = vrot.slane %v673, 2
        %v675 = vadd.f32 %v673, %v674
        %v676 = vrot.slane %v675, 1
        %v677 = vadd.f32 %v675, %v676
        %v678 = vmul.f32 %v677, 0.0625
        %v679 = vadd.f32 %v671, %v678
        %680 = vst [vmem:[#allocation3] sm:$0x1] %v679
        %p681 = scmp.eq.s32.totalorder %s27, 1
        // Predicated region
        $region53: #{tpu_custom_call.1} parent=39 // pred_check
          %p682 = pneg %p681
        $region54: #{tpu_custom_call.1} parent=39 // pred_check_branch
          %684 = sbr.rel (%p682) target = $region56
        $region55: #{tpu_custom_call.1} parent=39 // pred_region
          %v685 = vld [vmem:[#allocation2] sm:$0x1]
          %686 = vst [vmem:[#allocation10] sm:$0x1] %v685
          %v687 = vld [vmem:[#allocation3] sm:$0x1]
          %688 = vst [vmem:[#allocation12] sm:$0x1] %v687
        $region56: #{tpu_custom_call.1} parent=39 // pred_fallthru
          _
        %s689 = sand.u32 %s145, 1
        %s690 = scalar_lea.sflag [#allocation6], %s689
        %s691 = sand.u32 %s145, 1
        %s692 = smul.addr %s691, 8
        %s693 = scalar_lea.vmem [#allocation9], %s692
        // Predicated region
        $region57: #{tpu_custom_call.1} parent=39 // pred_check
          %p694 = pneg %p155
        $region58: #{tpu_custom_call.1} parent=39 // pred_check_branch
          %696 = sbr.rel (%p694) target = $region60
        $region59: #{tpu_custom_call.1} parent=39 // pred_region
          %s698 = ssub.s32 128, 128
          %699 = vsyncadd %s690, %s698
          %s700 = smul.addr %s27, 128
          %s701 = scalar_lea.hbm %s5, %s700
          %s703 = sshll.u32 %s693, 4
          %s704 = int_to_ptr.vmem [resolvable:$true] %s703
          %706 = dma.vmem_to_hbm [thread:$0]  %s704, 128, %s701, %s690
        $region60: #{tpu_custom_call.1} parent=39 // pred_fallthru
          _
        // Predicated region
        $region61: #{tpu_custom_call.1} parent=39 // pred_check
          %p707 = pneg %p176
        $region62: #{tpu_custom_call.1} parent=39 // pred_check_branch
          %709 = sbr.rel (%p707) target = $region64
        $region63: #{tpu_custom_call.1} parent=39 // pred_region
          %s711 = ssub.s32 16, 16
          %712 = vsyncadd [#allocation11], %s711
          %s714 = sshll.u32 [#allocation10], 4
          %s715 = int_to_ptr.vmem [resolvable:$true] %s714
          %717 = dma.vmem_to_hbm [thread:$0]  %s715, 16, %s6, [#allocation11]
        $region64: #{tpu_custom_call.1} parent=39 // pred_fallthru
          _
        // Predicated region
        $region65: #{tpu_custom_call.1} parent=39 // pred_check
          %p718 = pneg %p197
        $region66: #{tpu_custom_call.1} parent=39 // pred_check_branch
          %720 = sbr.rel (%p718) target = $region68
        $region67: #{tpu_custom_call.1} parent=39 // pred_region
          %s722 = ssub.s32 16, 16
          %723 = vsyncadd [#allocation11], %s722
          %s725 = sshll.u32 [#allocation12], 4
          %s726 = int_to_ptr.vmem [resolvable:$true] %s725
          %728 = dma.vmem_to_hbm [thread:$0]  %s726, 16, %s7, [#allocation11]
        $region68: #{tpu_custom_call.1} parent=39 // pred_fallthru
          _
        // Predicated region
        $region69: #{tpu_custom_call.1} parent=39 // pred_check
          %p729 = pneg %p176
        $region70: #{tpu_custom_call.1} parent=39 // pred_check_branch
          %731 = sbr.rel (%p729) target = $region72
        $region71: #{tpu_custom_call.1} parent=39 // pred_region
          %732 = dma.done [#allocation11], 16
        $region72: #{tpu_custom_call.1} parent=39 // pred_fallthru
          _
        // Predicated region
        $region73: #{tpu_custom_call.1} parent=39 // pred_check
          %p733 = pneg %p197
        $region74: #{tpu_custom_call.1} parent=39 // pred_check_branch
          %735 = sbr.rel (%p733) target = $region76
        $region75: #{tpu_custom_call.1} parent=39 // pred_region
          %736 = dma.done [#allocation11], 16
        $region76: #{tpu_custom_call.1} parent=39 // pred_fallthru
          _
      $region40: #{tpu_custom_call.1} parent=5 // pred_fallthru
        _
      %p737 = scmp.le.s32.totalorder 2, %s22
      // Predicated region
      $region77: #{tpu_custom_call.1} parent=5 // pred_check
        %p738 = pneg %p737
      $region78: #{tpu_custom_call.1} parent=5 // pred_check_branch
        %740 = sbr.rel (%p738) target = $region80
      $region79: #{tpu_custom_call.1} parent=5 // pred_region
        %s741 = ssub.s32 %s22, 2
        // Predicated region
        $region81: #{tpu_custom_call.1} parent=79 // pred_check
          %p742 = pneg %p161
        $region82: #{tpu_custom_call.1} parent=79 // pred_check_branch
          %744 = sbr.rel (%p742) target = $region84
        $region83: #{tpu_custom_call.1} parent=79 // pred_region
          %s745 = sand.u32 %s146, 1
          %s746 = scalar_lea.sflag [#allocation6], %s745
          %s747 = sand.u32 %s146, 1
          %s748 = smul.addr %s747, 8
          %s749 = scalar_lea.vmem [#allocation9], %s748
          %750 = dma.done %s746, 128
        $region84: #{tpu_custom_call.1} parent=79 // pred_fallthru
          _
      $region80: #{tpu_custom_call.1} parent=5 // pred_fallthru
        _
    $region6: #{tpu_custom_call.1} parent=1 // loop_footer
      %s26 = sadd.s32 1, %s22
    $region7: #{tpu_custom_call.1} parent=1 // loop_footer_branch
      %21 = sbr.rel target = $region3
    $region8: #{tpu_custom_call.1} parent=1 // loop_exit
      _
    %751 = vsyncpa [#allocation5], 1
    %s752 = scalar_lea.sflag [#allocation5], 1
    %753 = vsyncpa %s752, 1
    %754 = vsyncpa [#allocation8], 1
    %755 = vsyncpa [#allocation6], 1
    %s756 = scalar_lea.sflag [#allocation6], 1
    %757 = vsyncpa %s756, 1
    %758 = vsyncpa [#allocation11], 1

</llo_original>
